<compile_context>
chip_gen: v7x
topology: tpu7x:2x2x1
jax: 0.10.0
libtpu: 0.0.40
codegen_flags: <defaults>
</compile_context>

<pallas_src>
import functools

import jax
import jax.numpy as jnp
from jax.experimental import pallas as pl
from jax.experimental.pallas import tpu as pltpu


def _linear_block_kernel(w_ref, x_ref, shift_ref, o_ref):
    # w_ref:     (TCO, C_in)   BN-scale-folded 1x1 conv weights
    # x_ref:     (C_in, THW)   lane-dense spatial tile of one image (NCHW-native)
    # shift_ref: (TCO, 1)      folded BN shift = beta - mean * scale
    # o_ref:     (TCO, THW)    output tile, written directly in NCHW layout
    y = jnp.dot(w_ref[...], x_ref[...], preferred_element_type=jnp.float32)
    o_ref[...] = (y + shift_ref[...]).astype(o_ref.dtype)


def _choose_tiles(c_in, c_out, hw, in_bytes):
    """Pick (C_out tile, HW tile) under a ~40 MiB double-buffered VMEM budget."""
    tco = c_out if c_out <= 512 else 256       # tile C_out only when it is large

    def footprint(t):
        # double-buffered x + out tiles, plus resident weight + shift (f32 out)
        return 2 * (c_in * t * in_bytes + tco * t * 4 + tco * c_in * in_bytes) + 8 * tco

    if hw % 128 != 0:
        # The full spatial dim is always a legal block shape; fall back to a
        # masked multiple-of-128 tile only if the full dim would blow VMEM.
        if footprint(hw) <= (40 << 20) or hw < 128:
            return tco, hw
        thw = (min(hw, 2048) // 128) * 128
    else:
        thw = min(hw, 2048)                    # big lane-dense tile (HBM-roofline sweet spot)

    # Shrink while staying a multiple of 128 (Pallas masks ragged boundary blocks).
    while thw > 128 and footprint(thw) > (40 << 20):
        thw = max(128, ((thw // 2) // 128) * 128)
    return tco, thw


@functools.partial(jax.jit, static_argnames=("eps", "use_bf16"))
def linear_block_forward(x_nchw, weight, gamma, beta, running_mean, running_var,
                         eps=1e-5, use_bf16=False):
    """Conv2d(1x1, bias=False) + BatchNorm2d (eval mode). x in NCHW, float32 out."""
    n, c_in, h, w = x_nchw.shape
    c_out = weight.shape[0]
    hw = h * w

    # Fold BN (inference) into the conv: scale into weights, shift becomes a bias.
    scale = (gamma / jnp.sqrt(running_var + eps)).astype(jnp.float32)   # (C_out,)
    shift = (beta - running_mean * scale).astype(jnp.float32)           # (C_out,)
    w_mat = weight.reshape(c_out, c_in).astype(jnp.float32) * scale[:, None]
    shift2d = shift.reshape(c_out, 1)

    in_dtype = jnp.bfloat16 if use_bf16 else jnp.float32
    in_bytes = 2 if use_bf16 else 4

    # NCHW-native view: (N, C_in, H*W) is a free reshape — no transpose, no pad.
    x3 = x_nchw.reshape(n, c_in, hw).astype(in_dtype)
    w_mat = w_mat.astype(in_dtype)

    tco, thw = _choose_tiles(c_in, c_out, hw, in_bytes)
    grid = (n, pl.cdiv(c_out, tco), pl.cdiv(hw, thw))

    # VMEM budget: double-buffered tiles + weights, capped so it also fits v7x (64 MiB).
    fp = 2 * (c_in * thw * in_bytes + tco * thw * 4 + tco * c_in * in_bytes) + 8 * tco
    vmem_limit = int(min(max(2 * fp, 32 << 20), 48 << 20))

    cost = pl.CostEstimate(
        flops=2 * n * hw * c_in * c_out,
        transcendentals=0,
        bytes_accessed=n * hw * c_in * in_bytes + n * hw * c_out * 4
                       + c_in * c_out * in_bytes,
    )

    out3 = pl.pallas_call(
        _linear_block_kernel,
        out_shape=jax.ShapeDtypeStruct((n, c_out, hw), jnp.float32),
        grid_spec=pltpu.PrefetchScalarGridSpec(
            num_scalar_prefetch=0,
            grid=grid,
            in_specs=[
                pl.BlockSpec((tco, c_in), lambda b, co, j: (co, 0)),          # folded weights
                pl.BlockSpec((None, c_in, thw), lambda b, co, j: (b, 0, j)),  # x (batch squeezed)
                pl.BlockSpec((tco, 1), lambda b, co, j: (co, 0)),             # BN shift
            ],
            out_specs=pl.BlockSpec((None, tco, thw), lambda b, co, j: (b, co, j)),
        ),
        compiler_params=pltpu.CompilerParams(
            dimension_semantics=("parallel", "parallel", "parallel"),
            vmem_limit_bytes=vmem_limit,
        ),
        cost_estimate=cost,
    )(w_mat, x3, shift2d)

    return out3.reshape(n, c_out, h, w)   # free reshape back to NCHW


def _reference(x_nchw, weight, gamma, beta, running_mean, running_var, eps=1e-5):
    """Plain-JAX reference for the same eval-mode forward."""
    c_out, c_in = weight.shape[0], weight.shape[1]
    w_mat = weight.reshape(c_out, c_in)
    y = jnp.einsum("nchw,oc->nohw", x_nchw, w_mat)
    scale = gamma / jnp.sqrt(running_var + eps)
    shift = beta - running_mean * scale
    return y * scale[None, :, None, None] + shift[None, :, None, None]


if __name__ == "__main__":
    key = jax.random.PRNGKey(0)
    k_x, k_w, k_g, k_b, k_m, k_v = jax.random.split(key, 6)

    N, C_IN, C_OUT, H, W = 2, 4, 8, 16, 16

    x = jax.random.normal(k_x, (N, C_IN, H, W), dtype=jnp.float32)
    weight = jax.random.normal(k_w, (C_OUT, C_IN, 1, 1), dtype=jnp.float32) * 0.1
    gamma = jax.random.normal(k_g, (C_OUT,), dtype=jnp.float32) * 0.1 + 1.0
    beta = jax.random.normal(k_b, (C_OUT,), dtype=jnp.float32) * 0.1
    running_mean = jax.random.normal(k_m, (C_OUT,), dtype=jnp.float32) * 0.1
    running_var = jax.nn.softplus(jax.random.normal(k_v, (C_OUT,), dtype=jnp.float32)) + 0.5

    out = linear_block_forward(x, weight, gamma, beta, running_mean, running_var)
    out = jax.block_until_ready(out)

    ref = _reference(x, weight, gamma, beta, running_mean, running_var)
    assert out.shape == (N, C_OUT, H, W), out.shape
    assert jnp.allclose(out, ref, atol=1e-4, rtol=1e-4), float(jnp.max(jnp.abs(out - ref)))

    print("KERNEL_OK")
</pallas_src>

<mosaic_0001>
module attributes {stable_mosaic.version = 11 : i64} {
  func.func @_linear_block_kernel(%arg0: i32, %arg1: i32, %arg2: i32, %arg3: memref<8x4xf32, #tpu.memory_space<vmem>>, %arg4: memref<1x4x256xf32, #tpu.memory_space<vmem>>, %arg5: memref<8x1xf32, #tpu.memory_space<vmem>>, %arg6: memref<1x8x256xf32, #tpu.memory_space<vmem>>) attributes {dimension_semantics = [#tpu.dimension_semantics<parallel>, #tpu.dimension_semantics<parallel>, #tpu.dimension_semantics<parallel>], iteration_bounds = array<i64: 2, 1, 1>, scalar_prefetch = 0 : i64, scratch_operands = 0 : i64, tpu.core_type = #tpu.core_type<tc>, window_params = [{transform_indices = @transform_0, window_bounds = array<i64: 8, 4>}, {transform_indices = @transform_1, window_bounds = array<i64: 1, 4, 256>}, {transform_indices = @transform_2, window_bounds = array<i64: 8, 1>}, {transform_indices = @transform_3, window_bounds = array<i64: 1, 8, 256>}]} {
    %c0 = arith.constant 0 : index
    %c0_0 = arith.constant 0 : index
    %0 = vector.load %arg3[%c0, %c0_0] : memref<8x4xf32, #tpu.memory_space<vmem>>, vector<8x4xf32>
    %c0_1 = arith.constant 0 : index
    %c0_2 = arith.constant 0 : index
    %c0_3 = arith.constant 0 : index
    %1 = vector.load %arg4[%c0_1, %c0_2, %c0_3] : memref<1x4x256xf32, #tpu.memory_space<vmem>>, vector<1x4x256xf32>
    %2 = vector.shape_cast %1 : vector<1x4x256xf32> to vector<4x256xf32>
    %cst = arith.constant dense<0.000000e+00> : vector<8x256xf32>
    %3 = tpu.matmul %0, %2, %cst {dimension_numbers = #tpu.dot_dimension_numbers<[1], [0], [0], [1], [0, 0, 1, 1], [], []>} : vector<8x4xf32>, vector<4x256xf32>, vector<8x256xf32> -> vector<8x256xf32>
    %c0_4 = arith.constant 0 : index
    %c0_5 = arith.constant 0 : index
    %4 = vector.load %arg5[%c0_4, %c0_5] : memref<8x1xf32, #tpu.memory_space<vmem>>, vector<8x1xf32>
    %5 = vector.broadcast %4 : vector<8x1xf32> to vector<8x256xf32>
    %6 = arith.addf %3, %5 : vector<8x256xf32>
    %c0_6 = arith.constant 0 : index
    %c0_7 = arith.constant 0 : index
    %c0_8 = arith.constant 0 : index
    %7 = vector.load %arg6[%c0_6, %c0_7, %c0_8] : memref<1x8x256xf32, #tpu.memory_space<vmem>>, vector<1x8x256xf32>
    %8 = vector.shape_cast %7 : vector<1x8x256xf32> to vector<8x256xf32>
    %9 = vector.shape_cast %6 : vector<8x256xf32> to vector<1x8x256xf32>
    tpu.vector_store %arg6[%c0_6, %c0_7, %c0_8], %9 {strides = array<i32>} : memref<1x8x256xf32, #tpu.memory_space<vmem>>, vector<1x8x256xf32>,
    return
  }
  func.func @transform_0(%arg0: i32, %arg1: i32, %arg2: i32) -> (i32, i32) {
    %c0_i32 = arith.constant 0 : i32
    %c0_i32_0 = arith.constant 0 : i32
    return %arg1, %c0_i32 : i32, i32
  }
  func.func @transform_1(%arg0: i32, %arg1: i32, %arg2: i32) -> (i32, i32, i32) {
    %c0_i32 = arith.constant 0 : i32
    %c0_i32_0 = arith.constant 0 : i32
    return %arg0, %c0_i32, %arg2 : i32, i32, i32
  }
  func.func @transform_2(%arg0: i32, %arg1: i32, %arg2: i32) -> (i32, i32) {
    %c0_i32 = arith.constant 0 : i32
    %c0_i32_0 = arith.constant 0 : i32
    return %arg1, %c0_i32 : i32, i32
  }
  func.func @transform_3(%arg0: i32, %arg1: i32, %arg2: i32) -> (i32, i32, i32) {
    %c0_i32 = arith.constant 0 : i32
    return %arg0, %arg1, %arg2 : i32, i32, i32
  }
}

</mosaic_0001>

<llo_original>
// kernel: linear_block_forward.1
$region0: #{linear_block_forward.1}
  #allocation0 [shape = 'u32[]', space=smem, size = 0x4, offset = 0x4, fixed_abs, tag = 'smem constant byte address 0x4 - core index']
  #allocation1 [shape = 'u32[144,128]{1,0:T(1,128)}', space=vmem, size = 0x12000, scoped, tag = 'internal scratch']
  %s0 = inlined_call_operand.vmem [shape: f32[8,4], index: 0, kind: input, shape index: {}]
  %s1 = inlined_call_operand.vmem [shape: f32[2,4,256], index: 1, kind: input, shape index: {}]
  %s2 = inlined_call_operand.vmem [shape: f32[8,1], index: 2, kind: input, shape index: {}]
  %s3 = inlined_call_operand.vmem [shape: f32[2,8,256], index: 3, kind: output, shape index: {}]
  %s4 = sld [smem:[#allocation0]]
  $region45: #{linear_block_forward.1} parent=0
    _
  %s6 = ssub.s32 1, %s4
  %s7 = scalar_select 0, %s6, %s4
  loop: start=0, step=1, limit=4
  $region2: #{linear_block_forward.1} parent=0 // loop_pre_header
    _
  $region3: #{linear_block_forward.1} parent=0 // loop_header
    %s9 = sphi 0, %s13
    %p10 = scmp.ge.s32.totalorder %s9, 4
    %s16 = sphi 0, %s35
    %s17 = sphi 0, %s31
    %s18 = sphi 0, %s27
    %s19 = sphi 0, %s16
    %s20 = sphi 0, %s17
    %s21 = sphi 0, %s18
    %s22 = sphi 0, %s19
    %s23 = sphi 0, %s20
    %s24 = sphi 0, %s21
    %s38 = sphi 0, %s40
    %s41 = sphi 0, %s38
    %s42 = sphi 0, %s41
    %s58 = sphi 0, %s42
    %s66 = sphi 0, %s68
    %s69 = sphi 0, %s66
    %s70 = sphi 0, %s69
    %s86 = sphi 0, %s70
    %s92 = sphi 0, %s94
    %s95 = sphi 0, %s92
    %s96 = sphi 0, %s95
    %s112 = sphi 0, %s96
    %s122 = sphi 0, %s124
    %s125 = sphi 0, %s122
    %s126 = sphi 0, %s125
    %s142 = sphi 0, %s126
  $region4: #{linear_block_forward.1} parent=0 // loop_header_branch
    %12 = sbr.rel (%p10) target = $region8
  $region5: #{linear_block_forward.1} parent=0 // loop_body
    %s14 = ssub.s32 %s9, 1
    %s15 = ssub.s32 %s9, 2
    %s25 = sadd.s32 1, %s18
    %p26 = scmp.ge.s32.totalorder %s25, 1
    %s27 = scalar_select %p26, 0, %s25
    %s28 = sadd.s32 1, %s17
    %s29 = scalar_select %p26, %s28, %s17
    %p30 = scmp.ge.s32.totalorder %s29, 1
    %s31 = scalar_select %p30, 0, %s29
    %s32 = sadd.s32 1, %s16
    %s33 = scalar_select %p30, %s32, %s16
    %p34 = scmp.ge.s32.totalorder %s33, 2
    %s35 = scalar_select %p34, 0, %s33
    %s36 = ssub.s32 %s17, %s31
    %p37 = scmp.eq.s32.totalorder %s36, 0
    %s39 = sadd.s32 %s38, 1
    %s40 = scalar_select %p37, %s38, %s39
    %p43 = pneg %p37
    %p44 = scmp.eq.s32.totalorder %s9, 1
    %p45 = por %p43, %p44
    %p46 = scmp.ne.s32.totalorder %s38, %s41
    %p47 = scmp.eq.s32.totalorder %s9, 0
    %p48 = por %p46, %p47
    %p49 = scmp.ne.s32.totalorder %s38, %s41
    %p50 = scmp.eq.s32.totalorder %s14, 1
    %p51 = por %p49, %p50
    %p52 = scmp.ne.s32.totalorder %s41, %s42
    %p53 = scmp.eq.s32.totalorder %s14, 0
    %p54 = por %p52, %p53
    %p55 = scmp.ne.s32.totalorder %s41, %s42
    %p56 = scmp.eq.s32.totalorder %s15, 1
    %p57 = por %p55, %p56
    %p59 = scmp.ne.s32.totalorder %s42, %s58
    %p60 = scmp.eq.s32.totalorder %s15, 0
    %p61 = por %p59, %p60
    %s62 = ssub.s32 %s16, %s35
    %s63 = ssub.s32 %s18, %s27
    %s64 = sor.u32 %s62, %s63
    %p65 = scmp.eq.s32.totalorder %s64, 0
    %s67 = sadd.s32 %s66, 1
    %s68 = scalar_select %p65, %s66, %s67
    %p71 = pneg %p65
    %p72 = scmp.eq.s32.totalorder %s9, 1
    %p73 = por %p71, %p72
    %p74 = scmp.ne.s32.totalorder %s66, %s69
    %p75 = scmp.eq.s32.totalorder %s9, 0
    %p76 = por %p74, %p75
    %p77 = scmp.ne.s32.totalorder %s66, %s69
    %p78 = scmp.eq.s32.totalorder %s14, 1
    %p79 = por %p77, %p78
    %p80 = scmp.ne.s32.totalorder %s69, %s70
    %p81 = scmp.eq.s32.totalorder %s14, 0
    %p82 = por %p80, %p81
    %p83 = scmp.ne.s32.totalorder %s69, %s70
    %p84 = scmp.eq.s32.totalorder %s15, 1
    %p85 = por %p83, %p84
    %p87 = scmp.ne.s32.totalorder %s70, %s86
    %p88 = scmp.eq.s32.totalorder %s15, 0
    %p89 = por %p87, %p88
    %s90 = ssub.s32 %s17, %s31
    %p91 = scmp.eq.s32.totalorder %s90, 0
    %s93 = sadd.s32 %s92, 1
    %s94 = scalar_select %p91, %s92, %s93
    %p97 = pneg %p91
    %p98 = scmp.eq.s32.totalorder %s9, 1
    %p99 = por %p97, %p98
    %p100 = scmp.ne.s32.totalorder %s92, %s95
    %p101 = scmp.eq.s32.totalorder %s9, 0
    %p102 = por %p100, %p101
    %p103 = scmp.ne.s32.totalorder %s92, %s95
    %p104 = scmp.eq.s32.totalorder %s14, 1
    %p105 = por %p103, %p104
    %p106 = scmp.ne.s32.totalorder %s95, %s96
    %p107 = scmp.eq.s32.totalorder %s14, 0
    %p108 = por %p106, %p107
    %p109 = scmp.ne.s32.totalorder %s95, %s96
    %p110 = scmp.eq.s32.totalorder %s15, 1
    %p111 = por %p109, %p110
    %p113 = scmp.ne.s32.totalorder %s96, %s112
    %p114 = scmp.eq.s32.totalorder %s15, 0
    %p115 = por %p113, %p114
    %s116 = ssub.s32 %s16, %s35
    %s117 = ssub.s32 %s17, %s31
    %s118 = sor.u32 %s116, %s117
    %s119 = ssub.s32 %s18, %s27
    %s120 = sor.u32 %s118, %s119
    %p121 = scmp.eq.s32.totalorder %s120, 0
    %s123 = sadd.s32 %s122, 1
    %s124 = scalar_select %p121, %s122, %s123
    %p127 = pneg %p121
    %p128 = scmp.eq.s32.totalorder %s9, 1
    %p129 = por %p127, %p128
    %p130 = scmp.ne.s32.totalorder %s122, %s125
    %p131 = scmp.eq.s32.totalorder %s9, 0
    %p132 = por %p130, %p131
    %p133 = scmp.ne.s32.totalorder %s122, %s125
    %p134 = scmp.eq.s32.totalorder %s14, 1
    %p135 = por %p133, %p134
    %p136 = scmp.ne.s32.totalorder %s125, %s126
    %p137 = scmp.eq.s32.totalorder %s14, 0
    %p138 = por %p136, %p137
    %p139 = scmp.ne.s32.totalorder %s125, %s126
    %p140 = scmp.eq.s32.totalorder %s15, 1
    %p141 = por %p139, %p140
    %p143 = scmp.ne.s32.totalorder %s126, %s142
    %p144 = scmp.eq.s32.totalorder %s15, 0
    %p145 = por %p143, %p144
    %p146 = scmp.le.s32.totalorder 1, %s9
    %p147 = scmp.lt.s32.totalorder %s9, 3
    %p148 = pnand %p146, %p147
    %p149 = pneg %p148
    // Predicated region
    $region9: #{linear_block_forward.1} parent=5 // pred_check
      _
    $region10: #{linear_block_forward.1} parent=5 // pred_check_branch
      %151 = sbr.rel (%p148) target = $region12
    $region11: #{linear_block_forward.1} parent=5 // pred_region
      %s152 = ssub.s32 %s9, 1
      // Predicated region
      $region13: #{linear_block_forward.1} parent=11 // pred_check
        %p153 = pneg %p54
      $region14: #{linear_block_forward.1} parent=11 // pred_check_branch
        %155 = sbr.rel (%p153) target = $region16
      $region15: #{linear_block_forward.1} parent=11 // pred_region
        %p156 = scmp.lt.s32.totalorder %s20, 0
        %s157 = scalar_select %p156, %s20, 0
        %s158 = smul.addr %s157, 8
        %s159 = scalar_lea.vmem %s0, %s158
      $region16: #{linear_block_forward.1} parent=11 // pred_fallthru
        _
      // Predicated region
      $region17: #{linear_block_forward.1} parent=11 // pred_check
        %p160 = pneg %p108
      $region18: #{linear_block_forward.1} parent=11 // pred_check_branch
        %162 = sbr.rel (%p160) target = $region20
      $region19: #{linear_block_forward.1} parent=11 // pred_region
        %p163 = scmp.lt.s32.totalorder %s20, 0
        %s164 = scalar_select %p163, %s20, 0
        %s165 = smul.addr %s164, 8
        %s166 = scalar_lea.vmem %s2, %s165
      $region20: #{linear_block_forward.1} parent=11 // pred_fallthru
        _
    $region12: #{linear_block_forward.1} parent=5 // pred_fallthru
      _
    %p167 = scmp.lt.s32.totalorder %s9, 2
    // Predicated region
    $region21: #{linear_block_forward.1} parent=5 // pred_check
      %p168 = pneg %p167
    $region22: #{linear_block_forward.1} parent=5 // pred_check_branch
      %170 = sbr.rel (%p168) target = $region24
    $region23: #{linear_block_forward.1} parent=5 // pred_region
      // Predicated region
      $region25: #{linear_block_forward.1} parent=23 // pred_check
        %p171 = pneg %p76
      $region26: #{linear_block_forward.1} parent=23 // pred_check_branch
        %173 = sbr.rel (%p171) target = $region28
      $region27: #{linear_block_forward.1} parent=23 // pred_region
        %s174 = smul.u32 2, %s18
        %p175 = scmp.lt.s32.totalorder %s16, 1
        %s176 = scalar_select %p175, %s16, 1
        %p177 = scmp.lt.s32.totalorder %s174, 1
        %s178 = scalar_select %p177, %s174, 1
        %s179 = smul.addr %s176, 2
        %s180 = sadd.s32 %s178, %s179
        %s181 = smul.addr %s180, 4
        %s182 = scalar_lea.vmem %s1, %s181
        %s183 = smul.u32 2, %s18
      $region28: #{linear_block_forward.1} parent=23 // pred_fallthru
        _
    $region24: #{linear_block_forward.1} parent=5 // pred_fallthru
      _
    %p184 = scmp.le.s32.totalorder 1, %s9
    %p185 = scmp.lt.s32.totalorder %s9, 3
    %p186 = pnand %p184, %p185
    %p187 = pneg %p186
    // Predicated region
    $region29: #{linear_block_forward.1} parent=5 // pred_check
      _
    $region30: #{linear_block_forward.1} parent=5 // pred_check_branch
      %189 = sbr.rel (%p186) target = $region32
    $region31: #{linear_block_forward.1} parent=5 // pred_region
      %s190 = ssub.s32 %s9, 1
      %p191 = scmp.lt.s32.totalorder %s20, 0
      %s192 = scalar_select %p191, %s20, 0
      %s193 = smul.addr %s192, 8
      %s194 = scalar_lea.vmem %s0, %s193
      %p195 = pneg %p54
      %p196 = pneg %p51
      %s197 = smul.u32 2, %s21
      %p198 = scmp.lt.s32.totalorder %s19, 1
      %s199 = scalar_select %p198, %s19, 1
      %p200 = scmp.lt.s32.totalorder %s197, 1
      %s201 = scalar_select %p200, %s197, 1
      %s202 = smul.addr %s199, 2
      %s203 = sadd.s32 %s201, %s202
      %s204 = smul.addr %s203, 4
      %s205 = scalar_lea.vmem %s1, %s204
      %p206 = pneg %p82
      %p207 = pneg %p79
      %p208 = scmp.lt.s32.totalorder %s20, 0
      %s209 = scalar_select %p208, %s20, 0
      %s210 = smul.addr %s209, 8
      %s211 = scalar_lea.vmem %s2, %s210
      %p212 = pneg %p108
      %p213 = pneg %p105
      %p214 = pneg %p138
      %p215 = pneg %p135
      %s216 = smul.u32 2, %s21
      %p217 = scmp.lt.s32.totalorder %s19, 1
      %s218 = scalar_select %p217, %s19, 1
      %p219 = scmp.lt.s32.totalorder %s20, 0
      %s220 = scalar_select %p219, %s20, 0
      %p221 = scmp.lt.s32.totalorder %s216, 1
      %s222 = scalar_select %p221, %s216, 1
      %s223 = smul.addr %s220, 2
      %s224 = sadd.s32 %s222, %s223
      %s225 = smul.addr %s218, 2
      %s226 = sadd.s32 %s224, %s225
      %s227 = smul.addr %s226, 8
      %s228 = scalar_lea.vmem %s3, %s227
      %p229 = scmp.lt.s32.totalorder %s20, 0
      %s230 = scalar_select %p229, %s20, 0
      %s231 = smul.addr %s230, 8
      %s232 = scalar_lea.vmem %s0, %s231
      %s233 = smul.u32 2, %s21
      %p234 = scmp.lt.s32.totalorder %s19, 1
      %s235 = scalar_select %p234, %s19, 1
      %p236 = scmp.lt.s32.totalorder %s233, 1
      %s237 = scalar_select %p236, %s233, 1
      %s238 = smul.addr %s235, 2
      %s239 = sadd.s32 %s237, %s238
      %s240 = smul.addr %s239, 4
      %s241 = scalar_lea.vmem %s1, %s240
      %s242 = smul.u32 2, %s21
      %p243 = scmp.lt.s32.totalorder %s20, 0
      %s244 = scalar_select %p243, %s20, 0
      %s245 = smul.addr %s244, 8
      %s246 = scalar_lea.vmem %s2, %s245
      %s247 = smul.u32 2, %s21
      %p248 = scmp.lt.s32.totalorder %s19, 1
      %s249 = scalar_select %p248, %s19, 1
      %p250 = scmp.lt.s32.totalorder %s20, 0
      %s251 = scalar_select %p250, %s20, 0
      %p252 = scmp.lt.s32.totalorder %s247, 1
      %s253 = scalar_select %p252, %s247, 1
      %s254 = smul.addr %s251, 2
      %s255 = sadd.s32 %s253, %s254
      %s256 = smul.addr %s249, 2
      %s257 = sadd.s32 %s255, %s256
      %s258 = smul.addr %s257, 8
      %s259 = scalar_lea.vmem %s3, %s258
      %s260 = smul.u32 2, %s21
      %v261 = vld [vmem:[%s232] sm:$0xff]
      %v262 = vld [vmem:[%s241] sm:$0xff]
      %v263 = vld [vmem:[%s246] sm:$0xff]
      %265 = vset.pattern.permute.xlu0 0
      %266 = vperm.xlu0 %265, %v263
      %v267 = vpop.permute.xlu0 %266
      %v270 = vcombine.high %v262, %v262
      %vm271 = vcmask 31744
      %v273 = vsel %vm271, %v261, 0
      %vm275 = vcmask 1043456
      %v276 = vsel %vm275, %v262, 0
      %v278 = vsel %vm275, %v270, 0
      %280 = vmatprep.subr.mxu0 %v278
      %281 = vmatpush1.msra.mxu0 %v276
      %282 = vmatprep.subr.mxu0 0.0
      %283 = vmatpush1.msra.mxu0 0.0
      %284 = vmatprep.subr.mxu0 0.0
      %285 = vmatpush1.msra.mxu0 0.0
      %286 = vmatprep.subr.mxu0 0.0
      %287 = vmatpush1.msra.mxu0 0.0
      %288 = vmatprep.subr.mxu0 0.0
      %289 = vmatpush1.msra.mxu0 0.0
      %290 = vmatprep.subr.mxu0 0.0
      %291 = vmatpush1.msra.mxu0 0.0
      %292 = vmatprep.subr.mxu0 0.0
      %293 = vmatpush1.msra.mxu0 0.0
      %294 = vmatprep.subr.mxu0 0.0
      %295 = vmatpush1.msra.mxu0 0.0
      %296 = vmatprep.subr.mxu0 0.0
      %297 = vmatpush1.msra.mxu0 0.0
      %298 = vmatprep.subr.mxu0 0.0
      %299 = vmatpush1.msra.mxu0 0.0
      %300 = vmatprep.subr.mxu0 0.0
      %301 = vmatpush1.msra.mxu0 0.0
      %302 = vmatprep.subr.mxu0 0.0
      %303 = vmatpush1.msra.mxu0 0.0
      %304 = vmatprep.subr.mxu0 0.0
      %305 = vmatpush1.msra.mxu0 0.0
      %306 = vmatprep.subr.mxu0 0.0
      %307 = vmatpush1.msra.mxu0 0.0
      %308 = vmatprep.subr.mxu0 0.0
      %309 = vmatpush1.msra.mxu0 0.0
      %310 = vmatprep.subr.mxu0 0.0
      %311 = vmatpush1.msra.mxu0 0.0
      %312 = vmatprep.subr.mxu0 0.0
      %313 = vmatpush1.msra.mxu0 0.0
      %314 = vmatprep.subr.mxu0 0.0
      %315 = vmatpush1.msra.mxu0 0.0
      %316 = vmatprep.subr.mxu0 0.0
      %317 = vmatpush1.msra.mxu0 0.0
      %318 = vmatprep.subr.mxu0 0.0
      %319 = vmatpush1.msra.mxu0 0.0
      %320 = vmatprep.subr.mxu0 0.0
      %321 = vmatpush1.msra.mxu0 0.0
      %322 = vmatprep.subr.mxu0 0.0
      %323 = vmatpush1.msra.mxu0 0.0
      %324 = vmatprep.subr.mxu0 0.0
      %325 = vmatpush1.msra.mxu0 0.0
      %326 = vmatprep.subr.mxu0 0.0
      %327 = vmatpush1.msra.mxu0 0.0
      %328 = vmatprep.subr.mxu0 0.0
      %329 = vmatpush1.msra.mxu0 0.0
      %330 = vmatprep.subr.mxu0 0.0
      %331 = vmatpush1.msra.mxu0 0.0
      %332 = vmatprep.subr.mxu0 0.0
      %333 = vmatpush1.msra.mxu0 0.0
      %334 = vmatprep.subr.mxu0 0.0
      %335 = vmatpush1.msra.mxu0 0.0
      %336 = vmatprep.subr.mxu0 0.0
      %337 = vmatpush1.msra.mxu0 0.0
      %338 = vmatprep.subr.mxu0 0.0
      %339 = vmatpush1.msra.mxu0 0.0
      %340 = vmatprep.subr.mxu0 0.0
      %341 = vmatpush1.msra.mxu0 0.0
      %342 = vmatprep.subr.mxu0 0.0
      %343 = vmatpush1.msra.mxu0 0.0
      %344 = vmatprep.mubr.f32.mxu0 0.0
      %345 = vmatmul.mubr.f32.gmra.mrb[0].mxu0 %v273
      %v346 = vpop.f32.mrb[0].mxu0
      %v347 = vadd.f32 %v267, %v346
      %v348 = vpop.f32.mrb[0].mxu0
      %v349 = vadd.f32 %v267, %v348
      %350 = vdwg.mxu0
      %351 = vst [vmem:[%s259] sm:$0xff] %v347
      %352 = vst [vmem:[%s259 + $0x8] sm:$0xff] %v349
      %s353 = smul.u32 2, %s21
      %p354 = scmp.lt.s32.totalorder %s19, 1
      %s355 = scalar_select %p354, %s19, 1
      %p356 = scmp.lt.s32.totalorder %s20, 0
      %s357 = scalar_select %p356, %s20, 0
      %p358 = scmp.lt.s32.totalorder %s353, 1
      %s359 = scalar_select %p358, %s353, 1
      %s360 = smul.addr %s357, 2
      %s361 = sadd.s32 %s359, %s360
      %s362 = smul.addr %s355, 2
      %s363 = sadd.s32 %s361, %s362
      %s364 = smul.addr %s363, 8
      %s365 = scalar_lea.vmem %s3, %s364
      // Predicated region
      $region33: #{linear_block_forward.1} parent=31 // pred_check
        %p366 = pneg %p135
      $region34: #{linear_block_forward.1} parent=31 // pred_check_branch
        %368 = sbr.rel (%p366) target = $region36
      $region35: #{linear_block_forward.1} parent=31 // pred_region
        %s369 = smul.u32 2, %s21
      $region36: #{linear_block_forward.1} parent=31 // pred_fallthru
        _
    $region32: #{linear_block_forward.1} parent=5 // pred_fallthru
      _
    %p370 = scmp.le.s32.totalorder 2, %s9
    // Predicated region
    $region37: #{linear_block_forward.1} parent=5 // pred_check
      %p371 = pneg %p370
    $region38: #{linear_block_forward.1} parent=5 // pred_check_branch
      %373 = sbr.rel (%p371) target = $region40
    $region39: #{linear_block_forward.1} parent=5 // pred_region
      %s374 = ssub.s32 %s9, 2
      // Predicated region
      $region41: #{linear_block_forward.1} parent=39 // pred_check
        %p375 = pneg %p141
      $region42: #{linear_block_forward.1} parent=39 // pred_check_branch
        %377 = sbr.rel (%p375) target = $region44
      $region43: #{linear_block_forward.1} parent=39 // pred_region
        %s378 = smul.u32 2, %s24
        %p379 = scmp.lt.s32.totalorder %s22, 1
        %s380 = scalar_select %p379, %s22, 1
        %p381 = scmp.lt.s32.totalorder %s23, 0
        %s382 = scalar_select %p381, %s23, 0
        %p383 = scmp.lt.s32.totalorder %s378, 1
        %s384 = scalar_select %p383, %s378, 1
        %s385 = smul.addr %s382, 2
        %s386 = sadd.s32 %s384, %s385
        %s387 = smul.addr %s380, 2
        %s388 = sadd.s32 %s386, %s387
        %s389 = smul.addr %s388, 8
        %s390 = scalar_lea.vmem %s3, %s389
      $region44: #{linear_block_forward.1} parent=39 // pred_fallthru
        _
    $region40: #{linear_block_forward.1} parent=5 // pred_fallthru
      _
  $region6: #{linear_block_forward.1} parent=0 // loop_footer
    %s13 = sadd.s32 1, %s9
  $region7: #{linear_block_forward.1} parent=0 // loop_footer_branch
    %8 = sbr.rel target = $region3
  $region8: #{linear_block_forward.1} parent=0 // loop_exit
    _

</llo_original>
